<compile_context>
chip_gen: v5e
topology: v5e:2x2
jax: 0.10.0
libtpu: 0.0.40
codegen_flags: <defaults>
</compile_context>

<pallas_src>
import jax
import jax.numpy as jnp
from jax.experimental import pallas as pl
from jax.experimental.pallas import tpu as pltpu


# ----------------------------- Pallas kernel ---------------------------------

def _dyt_kernel(alpha_ref, x_ref, w_ref, b_ref, o_ref):
    alpha = alpha_ref[0]                                  # scalar from SMEM
    x = x_ref[...].astype(jnp.float32)
    y = jnp.tanh(alpha * x)                               # EUP transcendental
    out = y * w_ref[...].astype(jnp.float32) + b_ref[...].astype(jnp.float32)
    o_ref[...] = out.astype(o_ref.dtype)


def _round_up(n, m):
    return ((n + m - 1) // m) * m


def dyt_forward(x, alpha, weight, bias, *, vmem_budget_bytes=2 * 1024 * 1024):
    """Dynamic-Tanh forward.  x: (..., F); weight/bias: (F,); alpha: scalar."""
    orig_shape = x.shape
    F = orig_shape[-1]
    M = 1
    for d in orig_shape[:-1]:
        M *= d
    x2 = x.reshape(M, F)

    # Row tile: largest multiple of 8 whose (tm, F) f32 block fits the VMEM budget
    # (double-buffered by the pipeline), capped at 1024 rows and at the (padded)
    # problem size so tiny inputs don't over-pad.
    bytes_per_row = F * 4
    tm = max(8, min(1024, (vmem_budget_bytes // bytes_per_row) // 8 * 8))
    tm = min(tm, _round_up(max(M, 1), 8))
    M_pad = _round_up(max(M, 1), tm)
    if M_pad != M:
        x2 = jnp.pad(x2, ((0, M_pad - M), (0, 0)))

    grid = (M_pad // tm,)
    alpha_s = jnp.asarray(alpha, jnp.float32).reshape(1)   # SMEM scalar
    w2 = jnp.asarray(weight).reshape(1, F)
    b2 = jnp.asarray(bias).reshape(1, F)

    itemsize = jnp.dtype(x.dtype).itemsize
    cost = pl.CostEstimate(
        flops=3 * M_pad * F,                               # mul, mul, add
        transcendentals=M_pad * F,                         # tanh
        bytes_accessed=2 * M_pad * F * itemsize + 2 * F * 4 + 4,
    )

    out = pl.pallas_call(
        _dyt_kernel,
        out_shape=jax.ShapeDtypeStruct((M_pad, F), x.dtype),
        grid=grid,
        in_specs=[
            pl.BlockSpec(memory_space=pltpu.MemorySpace.SMEM),   # alpha (scalar)
            pl.BlockSpec((tm, F), lambda i: (i, 0)),             # x row tile
            pl.BlockSpec((1, F), lambda i: (0, 0)),              # weight (broadcast)
            pl.BlockSpec((1, F), lambda i: (0, 0)),              # bias   (broadcast)
        ],
        out_specs=pl.BlockSpec((tm, F), lambda i: (i, 0)),
        compiler_params=pltpu.CompilerParams(
            dimension_semantics=("parallel",),
            vmem_limit_bytes=32 * 1024 * 1024,
        ),
        cost_estimate=cost,
    )(alpha_s, x2, w2, b2)

    if M_pad != M:
        out = out[:M]
    return out.reshape(orig_shape)


# --------------------------------- demo ---------------------------------------

if __name__ == "__main__":
    key = jax.random.PRNGKey(0)
    batch, seq, hidden = 2, 8, 32
    k_x, k_w, k_b = jax.random.split(key, 3)

    x = jax.random.normal(k_x, (batch, seq, hidden), jnp.float32)

    # Module init is alpha=0.5, weight=ones, bias=zeros; perturb weight/bias so the
    # affine part of the op is actually exercised by the check.
    alpha = jnp.float32(0.5)
    weight = jnp.ones((hidden,), jnp.float32) + 0.1 * jax.random.normal(k_w, (hidden,))
    bias = 0.1 * jax.random.normal(k_b, (hidden,))

    out = jax.block_until_ready(dyt_forward(x, alpha, weight, bias))

    ref = jnp.tanh(alpha * x) * weight + bias
    assert out.shape == x.shape, (out.shape, x.shape)
    assert bool(jnp.all(jnp.isfinite(out)))
    err = float(jnp.max(jnp.abs(out - ref)))
    assert bool(jnp.allclose(out, ref, atol=1e-5, rtol=1e-5)), err

    print("KERNEL_OK")
</pallas_src>

<mosaic_0001>
module attributes {stable_mosaic.version = 11 : i64} {
  func.func @_dyt_kernel(%arg0: i32, %arg1: memref<1xf32, #tpu.memory_space<smem>>, %arg2: memref<16x32xf32, #tpu.memory_space<vmem>>, %arg3: memref<1x32xf32, #tpu.memory_space<vmem>>, %arg4: memref<1x32xf32, #tpu.memory_space<vmem>>, %arg5: memref<16x32xf32, #tpu.memory_space<vmem>>) attributes {dimension_semantics = [#tpu.dimension_semantics<parallel>], iteration_bounds = array<i64: 1>, scalar_prefetch = 0 : i64, scratch_operands = 0 : i64, tpu.core_type = #tpu.core_type<tc>, window_params = [{transform_indices = @transform_0, window_bounds = array<i64: 1>}, {transform_indices = @transform_1, window_bounds = array<i64: 16, 32>}, {pipeline_mode = #tpu.pipeline_mode<synchronous>, transform_indices = @transform_2, window_bounds = array<i64: 1, 32>}, {pipeline_mode = #tpu.pipeline_mode<synchronous>, transform_indices = @transform_3, window_bounds = array<i64: 1, 32>}, {transform_indices = @transform_4, window_bounds = array<i64: 16, 32>}]} {
    %c0 = arith.constant 0 : index
    %0 = memref.load %arg1[%c0] : memref<1xf32, #tpu.memory_space<smem>>
    %c0_0 = arith.constant 0 : index
    %c0_1 = arith.constant 0 : index
    %1 = vector.load %arg2[%c0_0, %c0_1] : memref<16x32xf32, #tpu.memory_space<vmem>>, vector<16x32xf32>
    %2 = vector.broadcast %0 : f32 to vector<16x32xf32>
    %3 = arith.mulf %2, %1 : vector<16x32xf32>
    %4 = math.tanh %3 : vector<16x32xf32>
    %c0_2 = arith.constant 0 : index
    %c0_3 = arith.constant 0 : index
    %5 = vector.load %arg3[%c0_2, %c0_3] : memref<1x32xf32, #tpu.memory_space<vmem>>, vector<1x32xf32>
    %6 = vector.broadcast %5 : vector<1x32xf32> to vector<16x32xf32>
    %7 = arith.mulf %4, %6 : vector<16x32xf32>
    %c0_4 = arith.constant 0 : index
    %c0_5 = arith.constant 0 : index
    %8 = vector.load %arg4[%c0_4, %c0_5] : memref<1x32xf32, #tpu.memory_space<vmem>>, vector<1x32xf32>
    %9 = vector.broadcast %8 : vector<1x32xf32> to vector<16x32xf32>
    %10 = arith.addf %7, %9 : vector<16x32xf32>
    %c0_6 = arith.constant 0 : index
    %c0_7 = arith.constant 0 : index
    %11 = vector.load %arg5[%c0_6, %c0_7] : memref<16x32xf32, #tpu.memory_space<vmem>>, vector<16x32xf32>
    tpu.vector_store %arg5[%c0_6, %c0_7], %10 {strides = array<i32>} : memref<16x32xf32, #tpu.memory_space<vmem>>, vector<16x32xf32>,
    return
  }
  func.func @transform_0(%arg0: i32) -> i32 {
    %c0_i32 = arith.constant 0 : i32
    %c0_i32_0 = arith.constant 0 : i32
    return %c0_i32 : i32
  }
  func.func @transform_1(%arg0: i32) -> (i32, i32) {
    %c0_i32 = arith.constant 0 : i32
    %c0_i32_0 = arith.constant 0 : i32
    return %arg0, %c0_i32 : i32, i32
  }
  func.func @transform_2(%arg0: i32) -> (i32, i32) {
    %c0_i32 = arith.constant 0 : i32
    %c0_i32_0 = arith.constant 0 : i32
    %c0_i32_1 = arith.constant 0 : i32
    return %c0_i32, %c0_i32_0 : i32, i32
  }
  func.func @transform_3(%arg0: i32) -> (i32, i32) {
    %c0_i32 = arith.constant 0 : i32
    %c0_i32_0 = arith.constant 0 : i32
    %c0_i32_1 = arith.constant 0 : i32
    return %c0_i32, %c0_i32_0 : i32, i32
  }
  func.func @transform_4(%arg0: i32) -> (i32, i32) {
    %c0_i32 = arith.constant 0 : i32
    %c0_i32_0 = arith.constant 0 : i32
    return %arg0, %c0_i32 : i32, i32
  }
}

</mosaic_0001>

<llo_original>
// kernel: tpu_custom_call.1
$region0: #{tpu_custom_call.1}
  #allocation0 [shape = 'u32[]', space=smem, size = 0x4, offset = 0x4, fixed_abs, tag = 'smem constant byte address 0x4 - core index']
  #allocation1 [shape = 'u32[72,128]{1,0:T(1,128)}', space=vmem, size = 0x9000, scoped, tag = 'internal scratch']
  #allocation2 [shape = 'f32[1]{0:T(128)S(6)}', space=smem, size = 0x200, scoped, tag = 'scoped memory for tpu_custom_call.1']
  %s0 = inlined_call_operand.<no memory space> [shape: f32[1], index: 0, kind: input, shape index: {}]
  %s1 = inlined_call_operand.hbm [shape: f32[16,32], index: 1, kind: input, shape index: {}]
  %s2 = inlined_call_operand.vmem [shape: f32[1,32], index: 2, kind: input, shape index: {}]
  %s3 = inlined_call_operand.vmem [shape: f32[1,32], index: 3, kind: input, shape index: {}]
  %s4 = inlined_call_operand.hbm [shape: f32[16,32], index: 4, kind: output, shape index: {}]
  %s5 = sld [smem:[#allocation0]]
  $region30: #{tpu_custom_call.1} parent=0
    _
  %s7 = ssub.s32 1, %s5
  %s8 = scalar_select 0, %s7, %s5
  %9 = sst [smem:[#allocation2]] %s0
  $region1: #{tpu_custom_call.1} parent=0
    #allocation3 [shape = 'u8[8192]{0}', space=vmem, size = 0x2000, scoped, tag = 'input window, operand 1, single buffered']
    #allocation4 [shape = 's32[1]{0}', space=sflag, size = 0x4, scoped, tag = 'scoped memory for tpu_custom_call.1']
    #allocation5 [shape = 's32[1]{0}', space=sflag, size = 0x4, scoped, tag = 'scoped memory for tpu_custom_call.1']
    #allocation6 [shape = 'u8[8192]{0}', space=vmem, size = 0x2000, scoped, tag = 'output window, operand 0, single buffered']
    %10 = vsyncpa [#allocation4], 0
    %11 = vsyncpa [#allocation5], 0
    // Predicated region
    $region2: #{tpu_custom_call.1} parent=1 // pred_check
      _
    $region3: #{tpu_custom_call.1} parent=1 // pred_check_branch
      %13 = sbr.rel (0) target = $region5
    $region4: #{tpu_custom_call.1} parent=1 // pred_region
      _
    $region5: #{tpu_custom_call.1} parent=1 // pred_fallthru
      _
    // Predicated region
    $region6: #{tpu_custom_call.1} parent=1 // pred_check
      _
    $region7: #{tpu_custom_call.1} parent=1 // pred_check_branch
      %15 = sbr.rel (0) target = $region9
    $region8: #{tpu_custom_call.1} parent=1 // pred_region
      %17 = vsyncadd [#allocation4], 0
      %s18 = sshll.u32 %s1, 4
      %s19 = int_to_ptr.hbm [resolvable:$true] %s18
      %s20 = sshll.u32 [#allocation3], 4
      %s21 = int_to_ptr.vmem [resolvable:$true] %s20
      %26 = dma.hbm_to_vmem [thread:$0]  %s19, 256, %s21, [#allocation4], 128, 128, 8
    $region9: #{tpu_custom_call.1} parent=1 // pred_fallthru
      _
    // Predicated region
    $region10: #{tpu_custom_call.1} parent=1 // pred_check
      _
    $region11: #{tpu_custom_call.1} parent=1 // pred_check_branch
      %28 = sbr.rel (0) target = $region13
    $region12: #{tpu_custom_call.1} parent=1 // pred_region
      _
    $region13: #{tpu_custom_call.1} parent=1 // pred_fallthru
      _
    // Predicated region
    $region14: #{tpu_custom_call.1} parent=1 // pred_check
      _
    $region15: #{tpu_custom_call.1} parent=1 // pred_check_branch
      %30 = sbr.rel (0) target = $region17
    $region16: #{tpu_custom_call.1} parent=1 // pred_region
      _
    $region17: #{tpu_custom_call.1} parent=1 // pred_fallthru
      _
    // Predicated region
    $region18: #{tpu_custom_call.1} parent=1 // pred_check
      _
    $region19: #{tpu_custom_call.1} parent=1 // pred_check_branch
      %32 = sbr.rel (0) target = $region21
    $region20: #{tpu_custom_call.1} parent=1 // pred_region
      %34 = dma.done [#allocation4], 256
    $region21: #{tpu_custom_call.1} parent=1 // pred_fallthru
      _
    %s35 = sld [smem:[#allocation2]]
    %v36 = vld [vmem:[#allocation3] sm:$0xff]
    %v37 = vld [vmem:[#allocation3 + $0x8] sm:$0xff]
    %v38 = vstv %s35
    %v39 = vmul.f32 %v38, %v36
    %v40 = vmul.f32 %v38, %v37
    %v41 = vtanh.pop %v39
    %v42 = vtanh.pop %v40
    %v43 = vld [vmem:[%s2] sm:$0x1]
    %v45 = vperm.slane %v43, 0
    %v47 = vmul.f32 %v41, %v45
    %v48 = vmul.f32 %v42, %v45
    %v49 = vld [vmem:[%s3] sm:$0x1]
    %v51 = vperm.slane %v49, 0
    %v53 = vadd.f32 %v47, %v51
    %v54 = vadd.f32 %v48, %v51
    %vm55 = vcmask 261120
    %56 = vst.msk [vmem:[#allocation6] sm:$0xff] %vm55, %v53
    %57 = vst.msk [vmem:[#allocation6 + $0x8] sm:$0xff] %vm55, %v54
    // Predicated region
    $region22: #{tpu_custom_call.1} parent=1 // pred_check
      _
    $region23: #{tpu_custom_call.1} parent=1 // pred_check_branch
      %59 = sbr.rel (0) target = $region25
    $region24: #{tpu_custom_call.1} parent=1 // pred_region
      %61 = vsyncadd [#allocation5], 0
      %s62 = sshll.u32 [#allocation6], 4
      %s63 = int_to_ptr.vmem [resolvable:$true] %s62
      %s64 = sshll.u32 %s4, 4
      %s65 = int_to_ptr.hbm [resolvable:$true] %s64
      %70 = dma.vmem_to_hbm [thread:$0]  %s63, 256, %s65, [#allocation5], 128, 128, 8
    $region25: #{tpu_custom_call.1} parent=1 // pred_fallthru
      _
    // Predicated region
    $region26: #{tpu_custom_call.1} parent=1 // pred_check
      _
    $region27: #{tpu_custom_call.1} parent=1 // pred_check_branch
      %72 = sbr.rel (0) target = $region29
    $region28: #{tpu_custom_call.1} parent=1 // pred_region
      %74 = dma.done [#allocation5], 256
    $region29: #{tpu_custom_call.1} parent=1 // pred_fallthru
      _
    %75 = vsyncpa [#allocation4], 1
    %76 = vsyncpa [#allocation5], 1

</llo_original>
